<compile_context>
chip_gen: v7x
topology: tpu7x:2x2x1
jax: 0.10.0
libtpu: 0.0.40
codegen_flags: <defaults>
</compile_context>

<pallas_src>
import functools

import jax
import jax.numpy as jnp
from jax.experimental import pallas as pl
from jax.experimental.pallas import tpu as pltpu

EPS = 1e-5  # nn.LayerNorm default

_MIB = 1024 * 1024
_SINGLE_PASS_LIMIT = 24 * _MIB      # per-grid-step working set before S-tiling
_TWO_PASS_TILE_BUDGET = 8 * _MIB    # per-step budget for the S-tiled path
_VMEM_CAP = 64 * _MIB               # v7x physical VMEM per TensorCore (smallest gen)


# ---------------------------------------------------------------------------
# shared math
# ---------------------------------------------------------------------------
def _layernorm_f32(x, gamma, beta, d_model):
    """LayerNorm over the last axis, f32 compute.

    Fused sum / sum-of-squares form: one elementwise pass over x and two lane
    reductions (vs mean -> center -> var).  f32 accumulation keeps the
    E[x^2]-mean^2 cancellation negligible for typical activations.
    """
    inv_d = 1.0 / float(d_model)
    s1 = jnp.sum(x, axis=-1, keepdims=True)
    s2 = jnp.sum(x * x, axis=-1, keepdims=True)
    mean = s1 * inv_d
    var = jnp.maximum(s2 * inv_d - mean * mean, 0.0)
    inv = jax.lax.rsqrt(var + EPS)          # EUP rsqrt (separate bundle slot)
    # gamma/beta are (1, D) and broadcast cleanly against (..., S, D).
    return (x - mean) * inv * gamma + beta


# ---------------------------------------------------------------------------
# kernels
# ---------------------------------------------------------------------------
def _single_pass_kernel(x_ref, gamma_ref, beta_ref, o_ref):
    # x_ref: (Bt, S, D); gamma/beta: (1, D) f32
    x = x_ref[...].astype(jnp.float32)
    gamma = gamma_ref[...]
    beta = beta_ref[...]
    x_hat = _layernorm_f32(x, gamma, beta, x.shape[-1])
    seq_bias = jnp.mean(x_hat, axis=-2, keepdims=True)   # mean over seq dim, per batch
    o_ref[...] = (x_hat - seq_bias).astype(o_ref.dtype)


def _seq_sum_kernel(x_ref, gamma_ref, beta_ref, sum_ref):
    # Pass 1: accumulate sum over S of LayerNorm(x) into a per-batch (1, D) f32 acc.
    # x_ref: (tS, D) (batch dim squeezed); sum_ref: (1, D) f32, resident across S axis.
    @pl.when(pl.program_id(1) == 0)
    def _():
        sum_ref[...] = jnp.zeros_like(sum_ref)

    x = x_ref[...].astype(jnp.float32)
    x_hat = _layernorm_f32(x, gamma_ref[...], beta_ref[...], x.shape[-1])
    sum_ref[...] += jnp.sum(x_hat, axis=-2, keepdims=True)


def _apply_kernel(x_ref, gamma_ref, beta_ref, sum_ref, o_ref, *, seq_len):
    # Pass 2: recompute LayerNorm for this S tile and subtract bias = sum / S.
    # x_ref / o_ref: (tS, D); sum_ref: (1, D) f32.
    x = x_ref[...].astype(jnp.float32)
    x_hat = _layernorm_f32(x, gamma_ref[...], beta_ref[...], x.shape[-1])
    bias = sum_ref[...] * (1.0 / float(seq_len))
    o_ref[...] = (x_hat - bias).astype(o_ref.dtype)


# ---------------------------------------------------------------------------
# sizing helpers
# ---------------------------------------------------------------------------
def _block_bytes(rows, d, dtype):
    """Rough per-grid-step VMEM bytes for a (rows, d) slab of `dtype`:
    double-buffered in + out blocks plus ~3 live f32 temporaries + params."""
    blk = rows * d
    item = jnp.dtype(dtype).itemsize
    return 2 * blk * item + 2 * blk * item + 3 * blk * 4 + 4 * d * 4


def _largest_divisor_leq(n, cap):
    cap = max(1, min(n, cap))
    for cand in range(cap, 0, -1):
        if n % cand == 0:
            return cand
    return 1


def _divisors(n):
    ds = set()
    i = 1
    while i * i <= n:
        if n % i == 0:
            ds.add(i)
            ds.add(n // i)
        i += 1
    return sorted(ds)


def _pick_tile_s(S, D, dtype):
    """Pick an S tile for the two-pass path.

    Legal tiles are either the full S (block dim == array dim) or a divisor
    of S that is a multiple of 8 (sublane-aligned), so the (tile_s, D) block
    always satisfies the (8, 128) tiling constraint.  Prefer the largest
    legal tile within the VMEM budget; if none fits, use the smallest legal
    tile (best effort)."""
    valid = [d for d in _divisors(S) if d == S or d % 8 == 0]
    within = [d for d in valid if _block_bytes(d, D, dtype) <= _TWO_PASS_TILE_BUDGET]
    if within:
        return max(within)
    return min(valid)


def _vmem_limit(needed_bytes):
    return int(min(_VMEM_CAP, max(2 * needed_bytes, 16 * _MIB)))


# ---------------------------------------------------------------------------
# wrappers
# ---------------------------------------------------------------------------
def _seasonal_single_pass(x, gamma2d, beta2d):
    B, S, D = x.shape
    one_slice = _block_bytes(S, D, x.dtype)

    # Pack batch elements per block to amortize per-step overhead (~0.35us),
    # but keep >= 2 grid steps when B >= 2 so both v7x TensorCores get work.
    bt_budget = max(1, _SINGLE_PASS_LIMIT // max(1, one_slice))
    bt_parallel = B if B < 2 else max(1, B // 2)
    bt = _largest_divisor_leq(B, min(bt_budget, bt_parallel))
    grid = (B // bt,)

    needed = _block_bytes(bt * S, D, x.dtype)
    return pl.pallas_call(
        _single_pass_kernel,
        out_shape=jax.ShapeDtypeStruct((B, S, D), x.dtype),
        grid_spec=pltpu.PrefetchScalarGridSpec(
            num_scalar_prefetch=0,
            grid=grid,
            in_specs=[
                pl.BlockSpec((bt, S, D), lambda b: (b, 0, 0)),
                pl.BlockSpec((1, D), lambda b: (0, 0)),
                pl.BlockSpec((1, D), lambda b: (0, 0)),
            ],
            out_specs=pl.BlockSpec((bt, S, D), lambda b: (b, 0, 0)),
        ),
        compiler_params=pltpu.CompilerParams(
            dimension_semantics=("parallel",),
            vmem_limit_bytes=_vmem_limit(needed),
        ),
    )(x, gamma2d, beta2d)


def _seasonal_two_pass(x, gamma2d, beta2d, tile_s=None):
    B, S, D = x.shape
    if tile_s is None:
        tile_s = _pick_tile_s(S, D, x.dtype)
    assert S % tile_s == 0, "tile_s must divide seq_len"
    assert tile_s == S or tile_s % 8 == 0, "tile_s must be sublane-aligned (multiple of 8) or == seq_len"
    n_s = S // tile_s
    vmem = _vmem_limit(_block_bytes(tile_s, D, x.dtype))

    # Pass 1: per-(batch, channel) sum over S of LayerNorm(x), f32 accumulator.
    seq_sum = pl.pallas_call(
        _seq_sum_kernel,
        out_shape=jax.ShapeDtypeStruct((B, 1, D), jnp.float32),
        grid_spec=pltpu.PrefetchScalarGridSpec(
            num_scalar_prefetch=0,
            grid=(B, n_s),
            in_specs=[
                pl.BlockSpec((pl.Squeezed(), tile_s, D), lambda b, s: (b, s, 0)),
                pl.BlockSpec((1, D), lambda b, s: (0, 0)),
                pl.BlockSpec((1, D), lambda b, s: (0, 0)),
            ],
            out_specs=pl.BlockSpec((pl.Squeezed(), 1, D), lambda b, s: (b, 0, 0)),
        ),
        compiler_params=pltpu.CompilerParams(
            dimension_semantics=("parallel", "arbitrary"),
            vmem_limit_bytes=vmem,
        ),
    )(x, gamma2d, beta2d)

    # Pass 2: recompute the (cheap) LayerNorm per tile and subtract sum / S.
    return pl.pallas_call(
        functools.partial(_apply_kernel, seq_len=S),
        out_shape=jax.ShapeDtypeStruct((B, S, D), x.dtype),
        grid_spec=pltpu.PrefetchScalarGridSpec(
            num_scalar_prefetch=0,
            grid=(B, n_s),
            in_specs=[
                pl.BlockSpec((pl.Squeezed(), tile_s, D), lambda b, s: (b, s, 0)),
                pl.BlockSpec((1, D), lambda b, s: (0, 0)),
                pl.BlockSpec((1, D), lambda b, s: (0, 0)),
                pl.BlockSpec((pl.Squeezed(), 1, D), lambda b, s: (b, 0, 0)),
            ],
            out_specs=pl.BlockSpec((pl.Squeezed(), tile_s, D), lambda b, s: (b, s, 0)),
        ),
        compiler_params=pltpu.CompilerParams(
            dimension_semantics=("parallel", "parallel"),
            vmem_limit_bytes=vmem,
        ),
    )(x, gamma2d, beta2d, seq_sum)


def seasonal_layer_norm(x, gamma, beta, *, force_two_pass=False, tile_s=None):
    """SeasonalLayerNorm forward.  x: (B, S, D); gamma, beta: (D,)."""
    B, S, D = x.shape
    # Cast affine params to f32 once here (avoid per-element casts in-kernel).
    gamma2d = gamma.reshape(1, D).astype(jnp.float32)
    beta2d = beta.reshape(1, D).astype(jnp.float32)

    if force_two_pass or tile_s is not None or _block_bytes(S, D, x.dtype) > _SINGLE_PASS_LIMIT:
        return _seasonal_two_pass(x, gamma2d, beta2d, tile_s=tile_s)
    return _seasonal_single_pass(x, gamma2d, beta2d)


# ---------------------------------------------------------------------------
# reference + self-test
# ---------------------------------------------------------------------------
def _reference(x, gamma, beta):
    xf = x.astype(jnp.float32)
    mean = xf.mean(axis=-1, keepdims=True)
    var = ((xf - mean) ** 2).mean(axis=-1, keepdims=True)
    x_hat = (xf - mean) / jnp.sqrt(var + EPS) * gamma.astype(jnp.float32) + beta.astype(jnp.float32)
    out = x_hat - x_hat.mean(axis=1, keepdims=True)
    return out.astype(x.dtype)


if __name__ == "__main__":
    key = jax.random.PRNGKey(0)

    def check(B, S, D, dtype, *, tol, force_two_pass=False, tile_s=None):
        kx, kg, kb = jax.random.split(jax.random.fold_in(key, B * 100000 + S * 1000 + D), 3)
        x = jax.random.normal(kx, (B, S, D), dtype=jnp.float32).astype(dtype)
        gamma = jnp.ones((D,), jnp.float32) + 0.1 * jax.random.normal(kg, (D,), jnp.float32)
        beta = 0.1 * jax.random.normal(kb, (D,), jnp.float32)

        out = seasonal_layer_norm(x, gamma, beta,
                                  force_two_pass=force_two_pass, tile_s=tile_s)
        out = jax.block_until_ready(out)
        ref = _reference(x, gamma, beta)

        assert out.shape == (B, S, D) and out.dtype == x.dtype
        ok = jnp.allclose(out.astype(jnp.float32), ref.astype(jnp.float32),
                          atol=tol, rtol=tol)
        assert bool(ok), f"mismatch vs reference for shape {(B, S, D)} dtype {dtype}"

    # 1) original tiny shape (f32, single-pass path).
    check(2, 8, 32, jnp.float32, tol=1e-4)
    # 2) lane-dense D, bf16 input (single-pass path).
    check(2, 16, 128, jnp.bfloat16, tol=3e-2)
    # 3) force the S-tiled two-pass path (accumulate over 2 seq tiles).
    check(2, 16, 128, jnp.float32, tol=1e-4, force_two_pass=True, tile_s=8)
    # 4) two-pass with auto tile selection (sublane-aligned tile of S).
    check(2, 32, 128, jnp.float32, tol=1e-4, force_two_pass=True)

    print("KERNEL_OK")
</pallas_src>

<mosaic_0001>
module attributes {stable_mosaic.version = 11 : i64} {
  func.func @_single_pass_kernel(%arg0: i32, %arg1: memref<1x8x32xf32, #tpu.memory_space<vmem>>, %arg2: memref<1x32xf32, #tpu.memory_space<vmem>>, %arg3: memref<1x32xf32, #tpu.memory_space<vmem>>, %arg4: memref<1x8x32xf32, #tpu.memory_space<vmem>>) attributes {dimension_semantics = [#tpu.dimension_semantics<parallel>], iteration_bounds = array<i64: 2>, scalar_prefetch = 0 : i64, scratch_operands = 0 : i64, tpu.core_type = #tpu.core_type<tc>, window_params = [{transform_indices = @transform_0, window_bounds = array<i64: 1, 8, 32>}, {pipeline_mode = #tpu.pipeline_mode<synchronous>, transform_indices = @transform_1, window_bounds = array<i64: 1, 32>}, {pipeline_mode = #tpu.pipeline_mode<synchronous>, transform_indices = @transform_2, window_bounds = array<i64: 1, 32>}, {transform_indices = @transform_3, window_bounds = array<i64: 1, 8, 32>}]} {
    %c0 = arith.constant 0 : index
    %c0_0 = arith.constant 0 : index
    %c0_1 = arith.constant 0 : index
    %0 = vector.load %arg1[%c0, %c0_0, %c0_1] : memref<1x8x32xf32, #tpu.memory_space<vmem>>, vector<1x8x32xf32>
    %c0_2 = arith.constant 0 : index
    %c0_3 = arith.constant 0 : index
    %1 = vector.load %arg2[%c0_2, %c0_3] : memref<1x32xf32, #tpu.memory_space<vmem>>, vector<1x32xf32>
    %c0_4 = arith.constant 0 : index
    %c0_5 = arith.constant 0 : index
    %2 = vector.load %arg3[%c0_4, %c0_5] : memref<1x32xf32, #tpu.memory_space<vmem>>, vector<1x32xf32>
    %cst = arith.constant dense<0.000000e+00> : vector<1x8xf32>
    %3 = vector.multi_reduction <add>, %0, %cst [2] : vector<1x8x32xf32> to vector<1x8xf32>
    %4 = vector.shape_cast %3 : vector<1x8xf32> to vector<1x8x1xf32>
    %5 = arith.mulf %0, %0 : vector<1x8x32xf32>
    %cst_6 = arith.constant dense<0.000000e+00> : vector<1x8xf32>
    %6 = vector.multi_reduction <add>, %5, %cst_6 [2] : vector<1x8x32xf32> to vector<1x8xf32>
    %7 = vector.shape_cast %6 : vector<1x8xf32> to vector<1x8x1xf32>
    %cst_7 = arith.constant 3.125000e-02 : f32
    %8 = vector.broadcast %cst_7 : f32 to vector<1x8x1xf32>
    %9 = arith.mulf %4, %8 : vector<1x8x1xf32>
    %cst_8 = arith.constant 3.125000e-02 : f32
    %10 = vector.broadcast %cst_8 : f32 to vector<1x8x1xf32>
    %11 = arith.mulf %7, %10 : vector<1x8x1xf32>
    %12 = arith.mulf %9, %9 : vector<1x8x1xf32>
    %13 = arith.subf %11, %12 : vector<1x8x1xf32>
    %cst_9 = arith.constant 0.000000e+00 : f32
    %14 = vector.broadcast %cst_9 : f32 to vector<1x8x1xf32>
    %15 = arith.maximumf %13, %14 : vector<1x8x1xf32>
    %cst_10 = arith.constant 9.99999974E-6 : f32
    %16 = vector.broadcast %cst_10 : f32 to vector<1x8x1xf32>
    %17 = arith.addf %15, %16 : vector<1x8x1xf32>
    %18 = math.rsqrt %17 : vector<1x8x1xf32>
    %19 = vector.broadcast %9 : vector<1x8x1xf32> to vector<1x8x32xf32>
    %20 = arith.subf %0, %19 : vector<1x8x32xf32>
    %21 = vector.broadcast %18 : vector<1x8x1xf32> to vector<1x8x32xf32>
    %22 = arith.mulf %20, %21 : vector<1x8x32xf32>
    %23 = vector.shape_cast %1 : vector<1x32xf32> to vector<1x1x32xf32>
    %24 = vector.broadcast %23 : vector<1x1x32xf32> to vector<1x8x32xf32>
    %25 = arith.mulf %22, %24 : vector<1x8x32xf32>
    %26 = vector.shape_cast %2 : vector<1x32xf32> to vector<1x1x32xf32>
    %27 = vector.broadcast %26 : vector<1x1x32xf32> to vector<1x8x32xf32>
    %28 = arith.addf %25, %27 : vector<1x8x32xf32>
    %cst_11 = arith.constant dense<0.000000e+00> : vector<1x32xf32>
    %29 = vector.multi_reduction <add>, %28, %cst_11 [1] : vector<1x8x32xf32> to vector<1x32xf32>
    %30 = vector.shape_cast %29 : vector<1x32xf32> to vector<1x1x32xf32>
    %cst_12 = arith.constant 8.000000e+00 : f32
    %31 = vector.broadcast %cst_12 : f32 to vector<1x1x32xf32>
    %32 = arith.divf %30, %31 : vector<1x1x32xf32>
    %33 = vector.broadcast %32 : vector<1x1x32xf32> to vector<1x8x32xf32>
    %34 = arith.subf %28, %33 : vector<1x8x32xf32>
    %c0_13 = arith.constant 0 : index
    %c0_14 = arith.constant 0 : index
    %c0_15 = arith.constant 0 : index
    %35 = vector.load %arg4[%c0_13, %c0_14, %c0_15] : memref<1x8x32xf32, #tpu.memory_space<vmem>>, vector<1x8x32xf32>
    tpu.vector_store %arg4[%c0_13, %c0_14, %c0_15], %34 {strides = array<i32>} : memref<1x8x32xf32, #tpu.memory_space<vmem>>, vector<1x8x32xf32>,
    return
  }
  func.func @transform_0(%arg0: i32) -> (i32, i32, i32) {
    %c0_i32 = arith.constant 0 : i32
    %c0_i32_0 = arith.constant 0 : i32
    %c0_i32_1 = arith.constant 0 : i32
    return %arg0, %c0_i32, %c0_i32_0 : i32, i32, i32
  }
  func.func @transform_1(%arg0: i32) -> (i32, i32) {
    %c0_i32 = arith.constant 0 : i32
    %c0_i32_0 = arith.constant 0 : i32
    %c0_i32_1 = arith.constant 0 : i32
    return %c0_i32, %c0_i32_0 : i32, i32
  }
  func.func @transform_2(%arg0: i32) -> (i32, i32) {
    %c0_i32 = arith.constant 0 : i32
    %c0_i32_0 = arith.constant 0 : i32
    %c0_i32_1 = arith.constant 0 : i32
    return %c0_i32, %c0_i32_0 : i32, i32
  }
  func.func @transform_3(%arg0: i32) -> (i32, i32, i32) {
    %c0_i32 = arith.constant 0 : i32
    %c0_i32_0 = arith.constant 0 : i32
    %c0_i32_1 = arith.constant 0 : i32
    return %arg0, %c0_i32, %c0_i32_0 : i32, i32, i32
  }
}

</mosaic_0001>

<llo_original>
// kernel: tpu_custom_call.1
$region0: #{tpu_custom_call.1}
  #allocation0 [shape = 'u32[]', space=smem, size = 0x4, offset = 0x4, fixed_abs, tag = 'smem constant byte address 0x4 - core index']
  #allocation1 [shape = 'u32[144,128]{1,0:T(1,128)}', space=vmem, size = 0x12000, scoped, tag = 'internal scratch']
  %s0 = inlined_call_operand.hbm [shape: f32[2,8,32], index: 0, kind: input, shape index: {}]
  %s1 = inlined_call_operand.vmem [shape: f32[1,32], index: 1, kind: input, shape index: {}]
  %s2 = inlined_call_operand.vmem [shape: f32[1,32], index: 2, kind: input, shape index: {}]
  %s3 = inlined_call_operand.hbm [shape: f32[2,8,32], index: 3, kind: output, shape index: {}]
  %s4 = sld [smem:[#allocation0]]
  $region49: #{tpu_custom_call.1} parent=0
    _
  %s6 = ssub.s32 1, %s4
  %s7 = scalar_select 0, %s6, %s4
  $region1: #{tpu_custom_call.1} parent=0
    #allocation2 [shape = 'u8[8192]{0}', space=vmem, size = 0x2000, scoped, tag = 'input window, operand 0']
    #allocation3 [shape = 's32[2]{0}', space=sflag, size = 0x8, scoped, tag = 'scoped memory for tpu_custom_call.1']
    #allocation4 [shape = 's32[2]{0}', space=sflag, size = 0x8, scoped, tag = 'scoped memory for tpu_custom_call.1']
    #allocation5 [shape = 'u8[8192]{0}', space=vmem, size = 0x2000, scoped, tag = 'output window, operand 0']
    %8 = vsyncpa [#allocation3], 0
    %s9 = scalar_lea.sflag [#allocation3], 1
    %10 = vsyncpa %s9, 0
    %11 = vsyncpa [#allocation4], 0
    %s12 = scalar_lea.sflag [#allocation4], 1
    %13 = vsyncpa %s12, 0
    loop: start=0, step=1, limit=4
    $region2: #{tpu_custom_call.1} parent=1 // loop_pre_header
      _
    $region3: #{tpu_custom_call.1} parent=1 // loop_header
      %s15 = sphi 0, %s19
      %p16 = scmp.ge.s32.totalorder %s15, 4
      %s25 = sphi 0, %s27
      %s28 = sphi 0, %s25
      %s29 = sphi 0, %s28
      %s45 = sphi 0, %s29
      %s49 = sphi 0, %s49
      %s51 = sphi 0, %s49
      %s52 = sphi 0, %s51
      %s66 = sphi 0, %s52
      %s70 = sphi 0, %s70
      %s72 = sphi 0, %s70
      %s73 = sphi 0, %s72
      %s87 = sphi 0, %s73
      %s93 = sphi 0, %s95
      %s96 = sphi 0, %s93
      %s97 = sphi 0, %s96
      %s113 = sphi 0, %s97
    $region4: #{tpu_custom_call.1} parent=1 // loop_header_branch
      %18 = sbr.rel (%p16) target = $region8
    $region5: #{tpu_custom_call.1} parent=1 // loop_body
      %s20 = ssub.s32 %s15, 1
      %s21 = ssub.s32 %s15, 2
      %s22 = sadd.s32 %s15, 1
      %s23 = ssub.s32 %s15, %s22
      %p24 = scmp.eq.s32.totalorder %s23, 0
      %s26 = sadd.s32 %s25, 1
      %s27 = scalar_select %p24, %s25, %s26
      %p30 = pneg %p24
      %p31 = scmp.eq.s32.totalorder %s15, 1
      %p32 = por %p30, %p31
      %p33 = scmp.ne.s32.totalorder %s25, %s28
      %p34 = scmp.eq.s32.totalorder %s15, 0
      %p35 = por %p33, %p34
      %p36 = scmp.ne.s32.totalorder %s25, %s28
      %p37 = scmp.eq.s32.totalorder %s20, 1
      %p38 = por %p36, %p37
      %p39 = scmp.ne.s32.totalorder %s28, %s29
      %p40 = scmp.eq.s32.totalorder %s20, 0
      %p41 = por %p39, %p40
      %p42 = scmp.ne.s32.totalorder %s28, %s29
      %p43 = scmp.eq.s32.totalorder %s21, 1
      %p44 = por %p42, %p43
      %p46 = scmp.ne.s32.totalorder %s29, %s45
      %p47 = scmp.eq.s32.totalorder %s21, 0
      %p48 = por %p46, %p47
      %s50 = sadd.s32 %s49, 1
      %p53 = scmp.eq.s32.totalorder %s15, 1
      %p54 = scmp.ne.s32.totalorder %s49, %s51
      %p55 = scmp.eq.s32.totalorder %s15, 0
      %p56 = por %p54, %p55
      %p57 = scmp.ne.s32.totalorder %s49, %s51
      %p58 = scmp.eq.s32.totalorder %s20, 1
      %p59 = por %p57, %p58
      %p60 = scmp.ne.s32.totalorder %s51, %s52
      %p61 = scmp.eq.s32.totalorder %s20, 0
      %p62 = por %p60, %p61
      %p63 = scmp.ne.s32.totalorder %s51, %s52
      %p64 = scmp.eq.s32.totalorder %s21, 1
      %p65 = por %p63, %p64
      %p67 = scmp.ne.s32.totalorder %s52, %s66
      %p68 = scmp.eq.s32.totalorder %s21, 0
      %p69 = por %p67, %p68
      %s71 = sadd.s32 %s70, 1
      %p74 = scmp.eq.s32.totalorder %s15, 1
      %p75 = scmp.ne.s32.totalorder %s70, %s72
      %p76 = scmp.eq.s32.totalorder %s15, 0
      %p77 = por %p75, %p76
      %p78 = scmp.ne.s32.totalorder %s70, %s72
      %p79 = scmp.eq.s32.totalorder %s20, 1
      %p80 = por %p78, %p79
      %p81 = scmp.ne.s32.totalorder %s72, %s73
      %p82 = scmp.eq.s32.totalorder %s20, 0
      %p83 = por %p81, %p82
      %p84 = scmp.ne.s32.totalorder %s72, %s73
      %p85 = scmp.eq.s32.totalorder %s21, 1
      %p86 = por %p84, %p85
      %p88 = scmp.ne.s32.totalorder %s73, %s87
      %p89 = scmp.eq.s32.totalorder %s21, 0
      %p90 = por %p88, %p89
      %s91 = ssub.s32 %s15, %s22
      %p92 = scmp.eq.s32.totalorder %s91, 0
      %s94 = sadd.s32 %s93, 1
      %s95 = scalar_select %p92, %s93, %s94
      %p98 = pneg %p92
      %p99 = scmp.eq.s32.totalorder %s15, 1
      %p100 = por %p98, %p99
      %p101 = scmp.ne.s32.totalorder %s93, %s96
      %p102 = scmp.eq.s32.totalorder %s15, 0
      %p103 = por %p101, %p102
      %p104 = scmp.ne.s32.totalorder %s93, %s96
      %p105 = scmp.eq.s32.totalorder %s20, 1
      %p106 = por %p104, %p105
      %p107 = scmp.ne.s32.totalorder %s96, %s97
      %p108 = scmp.eq.s32.totalorder %s20, 0
      %p109 = por %p107, %p108
      %p110 = scmp.ne.s32.totalorder %s96, %s97
      %p111 = scmp.eq.s32.totalorder %s21, 1
      %p112 = por %p110, %p111
      %p114 = scmp.ne.s32.totalorder %s97, %s113
      %p115 = scmp.eq.s32.totalorder %s21, 0
      %p116 = por %p114, %p115
      %p117 = scmp.le.s32.totalorder 1, %s15
      %p118 = scmp.lt.s32.totalorder %s15, 3
      %p119 = pnand %p117, %p118
      %p120 = pneg %p119
      // Predicated region
      $region9: #{tpu_custom_call.1} parent=5 // pred_check
        _
      $region10: #{tpu_custom_call.1} parent=5 // pred_check_branch
        %122 = sbr.rel (%p119) target = $region12
      $region11: #{tpu_custom_call.1} parent=5 // pred_region
        %s123 = ssub.s32 %s15, 1
        // Predicated region
        $region13: #{tpu_custom_call.1} parent=11 // pred_check
          %p124 = pneg %p62
        $region14: #{tpu_custom_call.1} parent=11 // pred_check_branch
          %126 = sbr.rel (%p124) target = $region16
        $region15: #{tpu_custom_call.1} parent=11 // pred_region
          _
        $region16: #{tpu_custom_call.1} parent=11 // pred_fallthru
          _
        // Predicated region
        $region17: #{tpu_custom_call.1} parent=11 // pred_check
          %p127 = pneg %p83
        $region18: #{tpu_custom_call.1} parent=11 // pred_check_branch
          %129 = sbr.rel (%p127) target = $region20
        $region19: #{tpu_custom_call.1} parent=11 // pred_region
          _
        $region20: #{tpu_custom_call.1} parent=11 // pred_fallthru
          _
      $region12: #{tpu_custom_call.1} parent=5 // pred_fallthru
        _
      %p130 = scmp.lt.s32.totalorder %s15, 2
      // Predicated region
      $region21: #{tpu_custom_call.1} parent=5 // pred_check
        %p131 = pneg %p130
      $region22: #{tpu_custom_call.1} parent=5 // pred_check_branch
        %133 = sbr.rel (%p131) target = $region24
      $region23: #{tpu_custom_call.1} parent=5 // pred_region
        // Predicated region
        $region25: #{tpu_custom_call.1} parent=23 // pred_check
          %p134 = pneg %p35
        $region26: #{tpu_custom_call.1} parent=23 // pred_check_branch
          %136 = sbr.rel (%p134) target = $region28
        $region27: #{tpu_custom_call.1} parent=23 // pred_region
          %s137 = sand.u32 %s25, 1
          %s138 = scalar_lea.sflag [#allocation3], %s137
          %s139 = sand.u32 %s25, 1
          %s140 = smul.addr %s139, 8
          %s141 = scalar_lea.vmem [#allocation2], %s140
          %s143 = ssub.s32 128, 128
          %144 = vsyncadd %s138, %s143
          %s145 = smul.addr %s15, 128
          %s146 = scalar_lea.hbm %s0, %s145
          %s148 = sshll.u32 %s141, 4
          %s149 = int_to_ptr.vmem [resolvable:$true] %s148
          %151 = dma.hbm_to_vmem [thread:$0]  %s146, 128, %s149, %s138
        $region28: #{tpu_custom_call.1} parent=23 // pred_fallthru
          _
      $region24: #{tpu_custom_call.1} parent=5 // pred_fallthru
        _
      %p152 = scmp.le.s32.totalorder 1, %s15
      %p153 = scmp.lt.s32.totalorder %s15, 3
      %p154 = pnand %p152, %p153
      %p155 = pneg %p154
      // Predicated region
      $region29: #{tpu_custom_call.1} parent=5 // pred_check
        _
      $region30: #{tpu_custom_call.1} parent=5 // pred_check_branch
        %157 = sbr.rel (%p154) target = $region32
      $region31: #{tpu_custom_call.1} parent=5 // pred_region
        %s158 = ssub.s32 %s15, 1
        %s159 = sand.u32 %s28, 1
        %s160 = scalar_lea.sflag [#allocation3], %s159
        %s161 = sand.u32 %s28, 1
        %s162 = smul.addr %s161, 8
        %s163 = scalar_lea.vmem [#allocation2], %s162
        // Predicated region
        $region33: #{tpu_custom_call.1} parent=31 // pred_check
          %p164 = pneg %p41
        $region34: #{tpu_custom_call.1} parent=31 // pred_check_branch
          %166 = sbr.rel (%p164) target = $region36
        $region35: #{tpu_custom_call.1} parent=31 // pred_region
          %167 = dma.done %s160, 128
        $region36: #{tpu_custom_call.1} parent=31 // pred_fallthru
          _
        %s168 = sand.u32 %s28, 1
        %s169 = scalar_lea.sflag [#allocation3], %s168
        %s170 = sand.u32 %s28, 1
        %s171 = smul.addr %s170, 8
        %s172 = scalar_lea.vmem [#allocation2], %s171
        %p173 = pneg %p41
        %p174 = pneg %p38
        %p175 = pneg %p62
        %p176 = pneg %p59
        %p177 = pneg %p83
        %p178 = pneg %p80
        %p179 = pneg %p109
        %p180 = pneg %p106
        %s181 = sand.u32 %s96, 1
        %s182 = scalar_lea.sflag [#allocation4], %s181
        %s183 = sand.u32 %s96, 1
        %s184 = smul.addr %s183, 8
        %s185 = scalar_lea.vmem [#allocation5], %s184
        %v186 = vld [vmem:[%s163] sm:$0xff]
        %v187 = vld [vmem:[%s1] sm:$0x1]
        %v188 = vld [vmem:[%s2] sm:$0x1]
        %vm189 = vcmask 261120
        %v190 = vsel %vm189, %v186, 0.0
        %191 = vadd.xlane.f32.xlu0 %v190
        %v192 = vpop.xlane.xlu0 %191
        %v193 = vmul.f32 %v186, %v186
        %v194 = vsel %vm189, %v193, 0.0
        %195 = vadd.xlane.f32.xlu0 %v194
        %v196 = vpop.xlane.xlu0 %195
        %v197 = vmul.f32 %v192, 0.03125
        %v198 = vmul.f32 %v196, 0.03125
        %v199 = vmul.f32 %v197, %v197
        %v200 = vsub.f32 %v198, %v199
        %v201 = vmax.f32 %v200, 0.0
        %v202 = vadd.f32 %v201, 1e-05
        %v203 = vrsqrt.pop %v202
        %v204 = vsub.f32 %v186, %v197
        %v205 = vmul.f32 %v204, %v203
        %v207 = vlaneseq
        %v208 = vshrl.u32 %v207, 7
        %v209 = vsub.s32 0, %v208
        %v210 = vrot.slane %v187, %v209
        %v212 = vmul.f32 %v205, %v210
        %v214 = vlaneseq
        %v215 = vshrl.u32 %v214, 7
        %v216 = vsub.s32 0, %v215
        %v217 = vrot.slane %v188, %v216
        %v219 = vadd.f32 %v212, %v217
        %v220 = vsel %vm189, %v219, 0.0
        %v221 = vrot.slane %v220, 4
        %v222 = vadd.f32 %v220, %v221
        %v223 = vrot.slane %v222, 2
        %v224 = vadd.f32 %v222, %v223
        %v225 = vrot.slane %v224, 1
        %v226 = vadd.f32 %v224, %v225
        %v227 = vrcp.pop 8.0
        %v228 = vmul.f32 %v226, %v227
        %v229 = vsub.f32 %v219, %v228
        %230 = vst.msk [vmem:[%s185] sm:$0xff] %vm189, %v229
        %s231 = sand.u32 %s96, 1
        %s232 = scalar_lea.sflag [#allocation4], %s231
        %s233 = sand.u32 %s96, 1
        %s234 = smul.addr %s233, 8
        %s235 = scalar_lea.vmem [#allocation5], %s234
        // Predicated region
        $region37: #{tpu_custom_call.1} parent=31 // pred_check
          %p236 = pneg %p106
        $region38: #{tpu_custom_call.1} parent=31 // pred_check_branch
          %238 = sbr.rel (%p236) target = $region40
        $region39: #{tpu_custom_call.1} parent=31 // pred_region
          %s240 = ssub.s32 128, 128
          %241 = vsyncadd %s232, %s240
          %s242 = smul.addr %s20, 128
          %s243 = scalar_lea.hbm %s3, %s242
          %s245 = sshll.u32 %s235, 4
          %s246 = int_to_ptr.vmem [resolvable:$true] %s245
          %248 = dma.vmem_to_hbm [thread:$0]  %s246, 128, %s243, %s232
        $region40: #{tpu_custom_call.1} parent=31 // pred_fallthru
          _
      $region32: #{tpu_custom_call.1} parent=5 // pred_fallthru
        _
      %p249 = scmp.le.s32.totalorder 2, %s15
      // Predicated region
      $region41: #{tpu_custom_call.1} parent=5 // pred_check
        %p250 = pneg %p249
      $region42: #{tpu_custom_call.1} parent=5 // pred_check_branch
        %252 = sbr.rel (%p250) target = $region44
      $region43: #{tpu_custom_call.1} parent=5 // pred_region
        %s253 = ssub.s32 %s15, 2
        // Predicated region
        $region45: #{tpu_custom_call.1} parent=43 // pred_check
          %p254 = pneg %p112
        $region46: #{tpu_custom_call.1} parent=43 // pred_check_branch
          %256 = sbr.rel (%p254) target = $region48
        $region47: #{tpu_custom_call.1} parent=43 // pred_region
          %s257 = sand.u32 %s97, 1
          %s258 = scalar_lea.sflag [#allocation4], %s257
          %s259 = sand.u32 %s97, 1
          %s260 = smul.addr %s259, 8
          %s261 = scalar_lea.vmem [#allocation5], %s260
          %262 = dma.done %s258, 128
        $region48: #{tpu_custom_call.1} parent=43 // pred_fallthru
          _
      $region44: #{tpu_custom_call.1} parent=5 // pred_fallthru
        _
    $region6: #{tpu_custom_call.1} parent=1 // loop_footer
      %s19 = sadd.s32 1, %s15
    $region7: #{tpu_custom_call.1} parent=1 // loop_footer_branch
      %14 = sbr.rel target = $region3
    $region8: #{tpu_custom_call.1} parent=1 // loop_exit
      _
    %263 = vsyncpa [#allocation3], 1
    %s264 = scalar_lea.sflag [#allocation3], 1
    %265 = vsyncpa %s264, 1
    %266 = vsyncpa [#allocation4], 1
    %s267 = scalar_lea.sflag [#allocation4], 1
    %268 = vsyncpa %s267, 1

</llo_original>
